<compile_context>
chip_gen: v7x
topology: tpu7x:2x2x1
jax: 0.10.0
libtpu: 0.0.40
codegen_flags: <defaults>
</compile_context>

<pallas_src>
from functools import partial
from math import ceil

import numpy as np
import jax
import jax.numpy as jnp
from jax.experimental import pallas as pl
from jax.experimental.pallas import tpu as pltpu


# ----------------------------- fused kernel ---------------------------------


def _ghost_fused_kernel(w1_ref, b1_ref, wd_ref, b2_ref, mask_ref, x_ref, o_ref,
                        *, dw, W, ratio, relu):
    """Fused GhostModule forward for a block of batch elements.

    w1_ref  : (Cp, Cin)    f32  BN1-folded 1x1 primary-conv weight
    b1_ref  : (Cp, 1)      f32  folded BN1 bias
    wd_ref  : (Cn, dw*dw)  f32  BN2-folded depthwise taps (taps on lanes)
    b2_ref  : (Cn, 1)      f32  folded BN2 bias
    mask_ref: (dw*dw, HW)  f32  per-tap 'same'-padding validity masks
    x_ref   : (B, Cin, HW)      input block, HW lane-dense
    o_ref   : (B, oup, HW)      concat([x1, x2], ch)[:, :oup], written once
    """
    bblk, cin, hw = x_ref.shape
    cp = w1_ref.shape[0]
    cn = wd_ref.shape[0]
    oup = o_ref.shape[1]
    n2 = oup - cp                      # cheap-branch channels actually kept
    pad = dw // 2

    w1 = w1_ref[...]
    b1 = b1_ref[...]
    wd = wd_ref[...]
    b2 = b2_ref[...]

    for b in range(bblk):              # static unroll over the batch block
        x = x_ref[b].astype(jnp.float32)                 # (Cin, HW)

        # ---- primary 1x1 conv + folded BN (+ReLU), kept VMEM-resident ------
        if cin <= 16:
            # Tiny contraction: exact f32 FMAs on the VPU (the MXU would be
            # <1% utilized and the op is DMA-bound anyway).
            x1 = jnp.zeros((cp, hw), jnp.float32)
            for c in range(cin):
                x1 = x1 + w1[:, c:c + 1] * x[c:c + 1, :]
        else:
            # Realistic GhostNet widths: MXU matmul, f32 accumulate.
            x1 = jnp.dot(w1, x, preferred_element_type=jnp.float32)
        x1 = x1 + b1
        if relu:
            x1 = jnp.maximum(x1, 0.0)

        # concat part 1: primary output goes straight to channels [0:Cp].
        o_ref[b, :cp, :] = x1.astype(o_ref.dtype)

        # depthwise source: new channel j reads primary channel j//(ratio-1).
        if ratio == 2:
            x1_src = x1                                   # identity mapping
        else:
            # TODO(synk): static sublane gather for ratio > 2 (correct but
            # unoptimized; not exercised by the default ratio=2).
            x1_src = jnp.concatenate(
                [x1[j // (ratio - 1):j // (ratio - 1) + 1, :]
                 for j in range(cn)], axis=0)

        # ---- dw x dw depthwise conv: lane rolls (XLU) + boundary masks -----
        acc = jnp.zeros((cn, hw), jnp.float32)
        for kh in range(dw):
            for kw in range(dw):
                k = kh * dw + kw
                delta = (kh - pad) * W + (kw - pad)       # flattened offset
                if delta == 0:
                    src = x1_src                          # centre tap: no halo
                else:
                    src = (pltpu.roll(x1_src, (-delta) % hw, axis=1)
                           * mask_ref[k:k + 1, :])
                acc = acc + wd[:, k:k + 1] * src
        y2 = acc + b2
        if relu:
            y2 = jnp.maximum(y2, 0.0)

        if n2 > 0:
            # concat part 2 + the out[:, :oup] slice, fused into this store.
            o_ref[b, cp:, :] = y2[:n2].astype(o_ref.dtype)


# ----------------------------- wrapper ---------------------------------------


def ghost_module_forward(x, w_primary, w_dw, bn1, bn2, *, oup, ratio=2,
                         dw_size=3, relu=True, eps=1e-5, batch_block=1):
    """GhostModule forward (inference mode), NCHW layout like PyTorch.

    x         : (N, Cin, H, W)
    w_primary : (Cp, Cin)        1x1 primary conv weight, Cp = ceil(oup/ratio)
    w_dw      : (Cn, dw, dw)     depthwise conv weight, Cn = Cp*(ratio-1)
    bn1, bn2  : (gamma, beta, running_mean, running_var) tuples
    """
    N, Cin, H, W = x.shape
    Cp = w_primary.shape[0]            # init_channels
    Cn = w_dw.shape[0]                 # new_channels
    pad = dw_size // 2
    HW = H * W
    KK = dw_size * dw_size
    dtype = x.dtype
    itemsize = x.dtype.itemsize

    if batch_block < 1 or (N % batch_block) != 0:
        batch_block = 1

    # ---- fold eval-mode BatchNorm into the conv weights / biases -----------
    g1, be1, m1, v1 = bn1
    s1 = g1 / jnp.sqrt(v1 + eps)
    w1f = (w_primary * s1[:, None]).astype(jnp.float32)            # (Cp, Cin)
    b1f = (be1 - m1 * s1).reshape(Cp, 1).astype(jnp.float32)       # (Cp, 1)

    g2, be2, m2, v2 = bn2
    s2 = g2 / jnp.sqrt(v2 + eps)
    wdf = (w_dw * s2[:, None, None]).reshape(Cn, KK).astype(jnp.float32)
    b2f = (be2 - m2 * s2).reshape(Cn, 1).astype(jnp.float32)       # (Cn, 1)

    # ---- per-tap 'same'-padding validity masks on the flattened HW axis ----
    hh = np.arange(HW) // W
    ww = np.arange(HW) % W
    masks_np = np.zeros((KK, HW), np.float32)
    for kh in range(dw_size):
        for kw in range(dw_size):
            dh, dc = kh - pad, kw - pad
            valid = ((hh + dh >= 0) & (hh + dh < H) &
                     (ww + dc >= 0) & (ww + dc < W))
            masks_np[kh * dw_size + kw] = valid.astype(np.float32)
    masks = jnp.asarray(masks_np)

    x_flat = x.reshape(N, Cin, HW)     # free reshape (contiguous)

    out_flat = pl.pallas_call(
        partial(_ghost_fused_kernel, dw=dw_size, W=W, ratio=ratio, relu=relu),
        out_shape=jax.ShapeDtypeStruct((N, oup, HW), dtype),
        grid=(N // batch_block,),
        in_specs=[
            pl.BlockSpec((Cp, Cin), lambda n: (0, 0)),
            pl.BlockSpec((Cp, 1), lambda n: (0, 0)),
            pl.BlockSpec((Cn, KK), lambda n: (0, 0)),
            pl.BlockSpec((Cn, 1), lambda n: (0, 0)),
            pl.BlockSpec((KK, HW), lambda n: (0, 0)),
            pl.BlockSpec((batch_block, Cin, HW), lambda n: (n, 0, 0)),
        ],
        out_specs=pl.BlockSpec((batch_block, oup, HW), lambda n: (n, 0, 0)),
        compiler_params=pltpu.CompilerParams(
            dimension_semantics=("parallel",),
            vmem_limit_bytes=32 * 1024 * 1024),
        cost_estimate=pl.CostEstimate(
            flops=2 * N * HW * (Cp * Cin + Cn * KK),
            transcendentals=0,
            bytes_accessed=(N * Cin * HW + N * oup * HW) * itemsize),
    )(w1f, b1f, wdf, b2f, masks, x_flat)

    return out_flat.reshape(N, oup, H, W)


# ----------------------------- reference -------------------------------------


def ghost_reference(x, w_primary, w_dw, bn1, bn2, *, oup, ratio=2, relu=True,
                    eps=1e-5):
    """Pure-JAX reference matching the PyTorch module in eval mode."""
    g1, be1, m1, v1 = bn1
    g2, be2, m2, v2 = bn2
    Cp = w_primary.shape[0]

    x1 = jnp.einsum('oc,nchw->nohw', w_primary, x,
                    precision=jax.lax.Precision.HIGHEST)
    x1 = (x1 - m1[None, :, None, None]) / jnp.sqrt(
        v1[None, :, None, None] + eps)
    x1 = x1 * g1[None, :, None, None] + be1[None, :, None, None]
    if relu:
        x1 = jnp.maximum(x1, 0.0)

    pad = w_dw.shape[-1] // 2
    x2 = jax.lax.conv_general_dilated(
        x1, w_dw[:, None, :, :], window_strides=(1, 1),
        padding=[(pad, pad), (pad, pad)],
        dimension_numbers=('NCHW', 'OIHW', 'NCHW'),
        feature_group_count=Cp,
        precision=jax.lax.Precision.HIGHEST)
    x2 = (x2 - m2[None, :, None, None]) / jnp.sqrt(
        v2[None, :, None, None] + eps)
    x2 = x2 * g2[None, :, None, None] + be2[None, :, None, None]
    if relu:
        x2 = jnp.maximum(x2, 0.0)

    out = jnp.concatenate([x1, x2], axis=1)
    return out[:, :oup]


# ----------------------------- demo / check ----------------------------------


if __name__ == "__main__":
    N, Cin, H, W = 2, 4, 16, 16
    oup, ratio, dw_size = 8, 2, 3
    Cp = ceil(oup / ratio)            # init_channels = 4
    Cn = Cp * (ratio - 1)             # new_channels  = 4

    key = jax.random.PRNGKey(0)
    ks = jax.random.split(key, 11)
    x = jax.random.normal(ks[0], (N, Cin, H, W), jnp.float32)
    w1 = 0.4 * jax.random.normal(ks[1], (Cp, Cin), jnp.float32)
    wd = 0.4 * jax.random.normal(ks[2], (Cn, dw_size, dw_size), jnp.float32)
    # eval-mode BatchNorm parameters: (gamma, beta, running_mean, running_var)
    bn1 = (1.0 + 0.1 * jax.random.normal(ks[3], (Cp,), jnp.float32),
           0.1 * jax.random.normal(ks[4], (Cp,), jnp.float32),
           0.05 * jax.random.normal(ks[5], (Cp,), jnp.float32),
           0.8 + 0.4 * jax.nn.sigmoid(
               jax.random.normal(ks[6], (Cp,), jnp.float32)))
    bn2 = (1.0 + 0.1 * jax.random.normal(ks[7], (Cn,), jnp.float32),
           0.1 * jax.random.normal(ks[8], (Cn,), jnp.float32),
           0.05 * jax.random.normal(ks[9], (Cn,), jnp.float32),
           0.8 + 0.4 * jax.nn.sigmoid(
               jax.random.normal(ks[10], (Cn,), jnp.float32)))

    fwd = jax.jit(partial(ghost_module_forward, oup=oup, ratio=ratio,
                          dw_size=dw_size, relu=True))
    out = jax.block_until_ready(fwd(x, w1, wd, bn1, bn2))

    ref = ghost_reference(x, w1, wd, bn1, bn2, oup=oup, ratio=ratio, relu=True)
    assert out.shape == (N, oup, H, W) and out.dtype == x.dtype
    max_err = float(jnp.max(jnp.abs(out - ref)))
    assert jnp.allclose(out, ref, atol=1e-4, rtol=1e-4), max_err

    print("KERNEL_OK")
</pallas_src>

<mosaic_0001>
module attributes {stable_mosaic.version = 11 : i64} {
  func.func @_ghost_fused_kernel(%arg0: i32, %arg1: memref<4x4xf32, #tpu.memory_space<vmem>>, %arg2: memref<4x1xf32, #tpu.memory_space<vmem>>, %arg3: memref<4x9xf32, #tpu.memory_space<vmem>>, %arg4: memref<4x1xf32, #tpu.memory_space<vmem>>, %arg5: memref<9x256xf32, #tpu.memory_space<vmem>>, %arg6: memref<1x4x256xf32, #tpu.memory_space<vmem>>, %arg7: memref<1x8x256xf32, #tpu.memory_space<vmem>>) attributes {dimension_semantics = [#tpu.dimension_semantics<parallel>], iteration_bounds = array<i64: 2>, scalar_prefetch = 0 : i64, scratch_operands = 0 : i64, tpu.core_type = #tpu.core_type<tc>, window_params = [{pipeline_mode = #tpu.pipeline_mode<synchronous>, transform_indices = @transform_0, window_bounds = array<i64: 4, 4>}, {pipeline_mode = #tpu.pipeline_mode<synchronous>, transform_indices = @transform_1, window_bounds = array<i64: 4, 1>}, {pipeline_mode = #tpu.pipeline_mode<synchronous>, transform_indices = @transform_2, window_bounds = array<i64: 4, 9>}, {pipeline_mode = #tpu.pipeline_mode<synchronous>, transform_indices = @transform_3, window_bounds = array<i64: 4, 1>}, {pipeline_mode = #tpu.pipeline_mode<synchronous>, transform_indices = @transform_4, window_bounds = array<i64: 9, 256>}, {transform_indices = @transform_5, window_bounds = array<i64: 1, 4, 256>}, {transform_indices = @transform_6, window_bounds = array<i64: 1, 8, 256>}]} {
    %c0 = arith.constant 0 : index
    %c0_0 = arith.constant 0 : index
    %0 = vector.load %arg1[%c0, %c0_0] : memref<4x4xf32, #tpu.memory_space<vmem>>, vector<4x4xf32>
    %c0_1 = arith.constant 0 : index
    %c0_2 = arith.constant 0 : index
    %1 = vector.load %arg2[%c0_1, %c0_2] : memref<4x1xf32, #tpu.memory_space<vmem>>, vector<4x1xf32>
    %c0_3 = arith.constant 0 : index
    %c0_4 = arith.constant 0 : index
    %2 = vector.load %arg3[%c0_3, %c0_4] : memref<4x9xf32, #tpu.memory_space<vmem>>, vector<4x9xf32>
    %c0_5 = arith.constant 0 : index
    %c0_6 = arith.constant 0 : index
    %3 = vector.load %arg4[%c0_5, %c0_6] : memref<4x1xf32, #tpu.memory_space<vmem>>, vector<4x1xf32>
    %c0_7 = arith.constant 0 : index
    %c0_8 = arith.constant 0 : index
    %c0_9 = arith.constant 0 : index
    %4 = vector.load %arg6[%c0_7, %c0_8, %c0_9] : memref<1x4x256xf32, #tpu.memory_space<vmem>>, vector<1x4x256xf32>
    %5 = vector.shape_cast %4 : vector<1x4x256xf32> to vector<4x256xf32>
    %cst = arith.constant 0.000000e+00 : f32
    %6 = vector.broadcast %cst : f32 to vector<4x256xf32>
    %7 = vector.extract_strided_slice %0 {offsets = [0, 0], sizes = [4, 1], strides = [1, 1]} : vector<4x4xf32> to vector<4x1xf32>
    %8 = vector.extract_strided_slice %5 {offsets = [0, 0], sizes = [1, 256], strides = [1, 1]} : vector<4x256xf32> to vector<1x256xf32>
    %9 = vector.broadcast %7 : vector<4x1xf32> to vector<4x256xf32>
    %10 = vector.broadcast %8 : vector<1x256xf32> to vector<4x256xf32>
    %11 = arith.mulf %9, %10 : vector<4x256xf32>
    %12 = arith.addf %6, %11 : vector<4x256xf32>
    %13 = vector.extract_strided_slice %0 {offsets = [0, 1], sizes = [4, 1], strides = [1, 1]} : vector<4x4xf32> to vector<4x1xf32>
    %14 = vector.extract_strided_slice %5 {offsets = [1, 0], sizes = [1, 256], strides = [1, 1]} : vector<4x256xf32> to vector<1x256xf32>
    %15 = vector.broadcast %13 : vector<4x1xf32> to vector<4x256xf32>
    %16 = vector.broadcast %14 : vector<1x256xf32> to vector<4x256xf32>
    %17 = arith.mulf %15, %16 : vector<4x256xf32>
    %18 = arith.addf %12, %17 : vector<4x256xf32>
    %19 = vector.extract_strided_slice %0 {offsets = [0, 2], sizes = [4, 1], strides = [1, 1]} : vector<4x4xf32> to vector<4x1xf32>
    %20 = vector.extract_strided_slice %5 {offsets = [2, 0], sizes = [1, 256], strides = [1, 1]} : vector<4x256xf32> to vector<1x256xf32>
    %21 = vector.broadcast %19 : vector<4x1xf32> to vector<4x256xf32>
    %22 = vector.broadcast %20 : vector<1x256xf32> to vector<4x256xf32>
    %23 = arith.mulf %21, %22 : vector<4x256xf32>
    %24 = arith.addf %18, %23 : vector<4x256xf32>
    %25 = vector.extract_strided_slice %0 {offsets = [0, 3], sizes = [4, 1], strides = [1, 1]} : vector<4x4xf32> to vector<4x1xf32>
    %26 = vector.extract_strided_slice %5 {offsets = [3, 0], sizes = [1, 256], strides = [1, 1]} : vector<4x256xf32> to vector<1x256xf32>
    %27 = vector.broadcast %25 : vector<4x1xf32> to vector<4x256xf32>
    %28 = vector.broadcast %26 : vector<1x256xf32> to vector<4x256xf32>
    %29 = arith.mulf %27, %28 : vector<4x256xf32>
    %30 = arith.addf %24, %29 : vector<4x256xf32>
    %31 = vector.broadcast %1 : vector<4x1xf32> to vector<4x256xf32>
    %32 = arith.addf %30, %31 : vector<4x256xf32>
    %cst_10 = arith.constant 0.000000e+00 : f32
    %33 = vector.broadcast %cst_10 : f32 to vector<4x256xf32>
    %34 = arith.maximumf %32, %33 : vector<4x256xf32>
    %c0_11 = arith.constant 0 : index
    %c0_12 = arith.constant 0 : index
    %c0_13 = arith.constant 0 : index
    %35 = vector.load %arg7[%c0_11, %c0_12, %c0_13] : memref<1x8x256xf32, #tpu.memory_space<vmem>>, vector<1x4x256xf32>
    %36 = vector.shape_cast %35 : vector<1x4x256xf32> to vector<4x256xf32>
    %37 = vector.shape_cast %34 : vector<4x256xf32> to vector<1x4x256xf32>
    tpu.vector_store %arg7[%c0_11, %c0_12, %c0_13], %37 {strides = array<i32>} : memref<1x8x256xf32, #tpu.memory_space<vmem>>, vector<1x4x256xf32>,
    %cst_14 = arith.constant 0.000000e+00 : f32
    %38 = vector.broadcast %cst_14 : f32 to vector<4x256xf32>
    %c17_i32 = arith.constant 17 : i32
    %39 = tpu.dynamic_rotate %34 by %c17_i32 dim 1 : vector<4x256xf32>, i32 -> vector<4x256xf32>
    %c0_15 = arith.constant 0 : index
    %c0_16 = arith.constant 0 : index
    %40 = vector.load %arg5[%c0_15, %c0_16] : memref<9x256xf32, #tpu.memory_space<vmem>>, vector<1x256xf32>
    %41 = vector.broadcast %40 : vector<1x256xf32> to vector<4x256xf32>
    %42 = arith.mulf %39, %41 : vector<4x256xf32>
    %43 = vector.extract_strided_slice %2 {offsets = [0, 0], sizes = [4, 1], strides = [1, 1]} : vector<4x9xf32> to vector<4x1xf32>
    %44 = vector.broadcast %43 : vector<4x1xf32> to vector<4x256xf32>
    %45 = arith.mulf %44, %42 : vector<4x256xf32>
    %46 = arith.addf %38, %45 : vector<4x256xf32>
    %c16_i32 = arith.constant 16 : i32
    %47 = tpu.dynamic_rotate %34 by %c16_i32 dim 1 : vector<4x256xf32>, i32 -> vector<4x256xf32>
    %c1 = arith.constant 1 : index
    %c0_17 = arith.constant 0 : index
    %48 = vector.load %arg5[%c1, %c0_17] : memref<9x256xf32, #tpu.memory_space<vmem>>, vector<1x256xf32>
    %49 = vector.broadcast %48 : vector<1x256xf32> to vector<4x256xf32>
    %50 = arith.mulf %47, %49 : vector<4x256xf32>
    %51 = vector.extract_strided_slice %2 {offsets = [0, 1], sizes = [4, 1], strides = [1, 1]} : vector<4x9xf32> to vector<4x1xf32>
    %52 = vector.broadcast %51 : vector<4x1xf32> to vector<4x256xf32>
    %53 = arith.mulf %52, %50 : vector<4x256xf32>
    %54 = arith.addf %46, %53 : vector<4x256xf32>
    %c15_i32 = arith.constant 15 : i32
    %55 = tpu.dynamic_rotate %34 by %c15_i32 dim 1 : vector<4x256xf32>, i32 -> vector<4x256xf32>
    %c2 = arith.constant 2 : index
    %c0_18 = arith.constant 0 : index
    %56 = vector.load %arg5[%c2, %c0_18] : memref<9x256xf32, #tpu.memory_space<vmem>>, vector<1x256xf32>
    %57 = vector.broadcast %56 : vector<1x256xf32> to vector<4x256xf32>
    %58 = arith.mulf %55, %57 : vector<4x256xf32>
    %59 = vector.extract_strided_slice %2 {offsets = [0, 2], sizes = [4, 1], strides = [1, 1]} : vector<4x9xf32> to vector<4x1xf32>
    %60 = vector.broadcast %59 : vector<4x1xf32> to vector<4x256xf32>
    %61 = arith.mulf %60, %58 : vector<4x256xf32>
    %62 = arith.addf %54, %61 : vector<4x256xf32>
    %c1_i32 = arith.constant 1 : i32
    %63 = tpu.dynamic_rotate %34 by %c1_i32 dim 1 : vector<4x256xf32>, i32 -> vector<4x256xf32>
    %c3 = arith.constant 3 : index
    %c0_19 = arith.constant 0 : index
    %64 = vector.load %arg5[%c3, %c0_19] : memref<9x256xf32, #tpu.memory_space<vmem>>, vector<1x256xf32>
    %65 = vector.broadcast %64 : vector<1x256xf32> to vector<4x256xf32>
    %66 = arith.mulf %63, %65 : vector<4x256xf32>
    %67 = vector.extract_strided_slice %2 {offsets = [0, 3], sizes = [4, 1], strides = [1, 1]} : vector<4x9xf32> to vector<4x1xf32>
    %68 = vector.broadcast %67 : vector<4x1xf32> to vector<4x256xf32>
    %69 = arith.mulf %68, %66 : vector<4x256xf32>
    %70 = arith.addf %62, %69 : vector<4x256xf32>
    %71 = vector.extract_strided_slice %2 {offsets = [0, 4], sizes = [4, 1], strides = [1, 1]} : vector<4x9xf32> to vector<4x1xf32>
    %72 = vector.broadcast %71 : vector<4x1xf32> to vector<4x256xf32>
    %73 = arith.mulf %72, %34 : vector<4x256xf32>
    %74 = arith.addf %70, %73 : vector<4x256xf32>
    %c255_i32 = arith.constant 255 : i32
    %75 = tpu.dynamic_rotate %34 by %c255_i32 dim 1 : vector<4x256xf32>, i32 -> vector<4x256xf32>
    %c5 = arith.constant 5 : index
    %c0_20 = arith.constant 0 : index
    %76 = vector.load %arg5[%c5, %c0_20] : memref<9x256xf32, #tpu.memory_space<vmem>>, vector<1x256xf32>
    %77 = vector.broadcast %76 : vector<1x256xf32> to vector<4x256xf32>
    %78 = arith.mulf %75, %77 : vector<4x256xf32>
    %79 = vector.extract_strided_slice %2 {offsets = [0, 5], sizes = [4, 1], strides = [1, 1]} : vector<4x9xf32> to vector<4x1xf32>
    %80 = vector.broadcast %79 : vector<4x1xf32> to vector<4x256xf32>
    %81 = arith.mulf %80, %78 : vector<4x256xf32>
    %82 = arith.addf %74, %81 : vector<4x256xf32>
    %c241_i32 = arith.constant 241 : i32
    %83 = tpu.dynamic_rotate %34 by %c241_i32 dim 1 : vector<4x256xf32>, i32 -> vector<4x256xf32>
    %c6 = arith.constant 6 : index
    %c0_21 = arith.constant 0 : index
    %84 = vector.load %arg5[%c6, %c0_21] : memref<9x256xf32, #tpu.memory_space<vmem>>, vector<1x256xf32>
    %85 = vector.broadcast %84 : vector<1x256xf32> to vector<4x256xf32>
    %86 = arith.mulf %83, %85 : vector<4x256xf32>
    %87 = vector.extract_strided_slice %2 {offsets = [0, 6], sizes = [4, 1], strides = [1, 1]} : vector<4x9xf32> to vector<4x1xf32>
    %88 = vector.broadcast %87 : vector<4x1xf32> to vector<4x256xf32>
    %89 = arith.mulf %88, %86 : vector<4x256xf32>
    %90 = arith.addf %82, %89 : vector<4x256xf32>
    %c240_i32 = arith.constant 240 : i32
    %91 = tpu.dynamic_rotate %34 by %c240_i32 dim 1 : vector<4x256xf32>, i32 -> vector<4x256xf32>
    %c7 = arith.constant 7 : index
    %c0_22 = arith.constant 0 : index
    %92 = vector.load %arg5[%c7, %c0_22] : memref<9x256xf32, #tpu.memory_space<vmem>>, vector<1x256xf32>
    %93 = vector.broadcast %92 : vector<1x256xf32> to vector<4x256xf32>
    %94 = arith.mulf %91, %93 : vector<4x256xf32>
    %95 = vector.extract_strided_slice %2 {offsets = [0, 7], sizes = [4, 1], strides = [1, 1]} : vector<4x9xf32> to vector<4x1xf32>
    %96 = vector.broadcast %95 : vector<4x1xf32> to vector<4x256xf32>
    %97 = arith.mulf %96, %94 : vector<4x256xf32>
    %98 = arith.addf %90, %97 : vector<4x256xf32>
    %c239_i32 = arith.constant 239 : i32
    %99 = tpu.dynamic_rotate %34 by %c239_i32 dim 1 : vector<4x256xf32>, i32 -> vector<4x256xf32>
    %c8 = arith.constant 8 : index
    %c0_23 = arith.constant 0 : index
    %100 = vector.load %arg5[%c8, %c0_23] : memref<9x256xf32, #tpu.memory_space<vmem>>, vector<1x256xf32>
    %101 = vector.broadcast %100 : vector<1x256xf32> to vector<4x256xf32>
    %102 = arith.mulf %99, %101 : vector<4x256xf32>
    %103 = vector.extract_strided_slice %2 {offsets = [0, 8], sizes = [4, 1], strides = [1, 1]} : vector<4x9xf32> to vector<4x1xf32>
    %104 = vector.broadcast %103 : vector<4x1xf32> to vector<4x256xf32>
    %105 = arith.mulf %104, %102 : vector<4x256xf32>
    %106 = arith.addf %98, %105 : vector<4x256xf32>
    %107 = vector.broadcast %3 : vector<4x1xf32> to vector<4x256xf32>
    %108 = arith.addf %106, %107 : vector<4x256xf32>
    %cst_24 = arith.constant 0.000000e+00 : f32
    %109 = vector.broadcast %cst_24 : f32 to vector<4x256xf32>
    %110 = arith.maximumf %108, %109 : vector<4x256xf32>
    %c0_25 = arith.constant 0 : index
    %c4 = arith.constant 4 : index
    %c0_26 = arith.constant 0 : index
    %111 = vector.load %arg7[%c0_25, %c4, %c0_26] : memref<1x8x256xf32, #tpu.memory_space<vmem>>, vector<1x4x256xf32>
    %112 = vector.shape_cast %111 : vector<1x4x256xf32> to vector<4x256xf32>
    %113 = vector.shape_cast %110 : vector<4x256xf32> to vector<1x4x256xf32>
    tpu.vector_store %arg7[%c0_25, %c4, %c0_26], %113 {strides = array<i32>} : memref<1x8x256xf32, #tpu.memory_space<vmem>>, vector<1x4x256xf32>,
    return
  }
  func.func @transform_0(%arg0: i32) -> (i32, i32) {
    %c0_i32 = arith.constant 0 : i32
    %c0_i32_0 = arith.constant 0 : i32
    %c0_i32_1 = arith.constant 0 : i32
    return %c0_i32, %c0_i32_0 : i32, i32
  }
  func.func @transform_1(%arg0: i32) -> (i32, i32) {
    %c0_i32 = arith.constant 0 : i32
    %c0_i32_0 = arith.constant 0 : i32
    %c0_i32_1 = arith.constant 0 : i32
    return %c0_i32, %c0_i32_0 : i32, i32
  }
  func.func @transform_2(%arg0: i32) -> (i32, i32) {
    %c0_i32 = arith.constant 0 : i32
    %c0_i32_0 = arith.constant 0 : i32
    %c0_i32_1 = arith.constant 0 : i32
    return %c0_i32, %c0_i32_0 : i32, i32
  }
  func.func @transform_3(%arg0: i32) -> (i32, i32) {
    %c0_i32 = arith.constant 0 : i32
    %c0_i32_0 = arith.constant 0 : i32
    %c0_i32_1 = arith.constant 0 : i32
    return %c0_i32, %c0_i32_0 : i32, i32
  }
  func.func @transform_4(%arg0: i32) -> (i32, i32) {
    %c0_i32 = arith.constant 0 : i32
    %c0_i32_0 = arith.constant 0 : i32
    %c0_i32_1 = arith.constant 0 : i32
    return %c0_i32, %c0_i32_0 : i32, i32
  }
  func.func @transform_5(%arg0: i32) -> (i32, i32, i32) {
    %c0_i32 = arith.constant 0 : i32
    %c0_i32_0 = arith.constant 0 : i32
    %c0_i32_1 = arith.constant 0 : i32
    return %arg0, %c0_i32, %c0_i32_0 : i32, i32, i32
  }
  func.func @transform_6(%arg0: i32) -> (i32, i32, i32) {
    %c0_i32 = arith.constant 0 : i32
    %c0_i32_0 = arith.constant 0 : i32
    %c0_i32_1 = arith.constant 0 : i32
    return %arg0, %c0_i32, %c0_i32_0 : i32, i32, i32
  }
}

</mosaic_0001>

<llo_original>
// kernel: ghost_module_forward.1
$region0: #{ghost_module_forward.1}
  #allocation0 [shape = 'u32[]', space=smem, size = 0x4, offset = 0x4, fixed_abs, tag = 'smem constant byte address 0x4 - core index']
  #allocation1 [shape = 'u32[144,128]{1,0:T(1,128)}', space=vmem, size = 0x12000, scoped, tag = 'internal scratch']
  %s0 = inlined_call_operand.vmem [shape: f32[4,4], index: 0, kind: input, shape index: {}]
  %s1 = inlined_call_operand.vmem [shape: f32[4,1], index: 1, kind: input, shape index: {}]
  %s2 = inlined_call_operand.vmem [shape: f32[4,9], index: 2, kind: input, shape index: {}]
  %s3 = inlined_call_operand.vmem [shape: f32[4,1], index: 3, kind: input, shape index: {}]
  %s4 = inlined_call_operand.vmem [shape: f32[9,256], index: 4, kind: input, shape index: {}]
  %s5 = inlined_call_operand.vmem [shape: f32[2,4,256], index: 5, kind: input, shape index: {}]
  %s6 = inlined_call_operand.vmem [shape: f32[2,8,256], index: 6, kind: output, shape index: {}]
  %s7 = sld [smem:[#allocation0]]
  $region57: #{ghost_module_forward.1} parent=0
    _
  %s9 = ssub.s32 1, %s7
  %s10 = scalar_select 0, %s9, %s7
  loop: start=0, step=1, limit=4
  $region2: #{ghost_module_forward.1} parent=0 // loop_pre_header
    _
  $region3: #{ghost_module_forward.1} parent=0 // loop_header
    %s12 = sphi 0, %s16
    %p13 = scmp.ge.s32.totalorder %s12, 4
    %s20 = sphi 0, %s20
    %s22 = sphi 0, %s20
    %s23 = sphi 0, %s22
    %s37 = sphi 0, %s23
    %s41 = sphi 0, %s41
    %s43 = sphi 0, %s41
    %s44 = sphi 0, %s43
    %s58 = sphi 0, %s44
    %s62 = sphi 0, %s62
    %s64 = sphi 0, %s62
    %s65 = sphi 0, %s64
    %s79 = sphi 0, %s65
    %s83 = sphi 0, %s83
    %s85 = sphi 0, %s83
    %s86 = sphi 0, %s85
    %s100 = sphi 0, %s86
    %s104 = sphi 0, %s104
    %s106 = sphi 0, %s104
    %s107 = sphi 0, %s106
    %s121 = sphi 0, %s107
    %s127 = sphi 0, %s129
    %s130 = sphi 0, %s127
    %s131 = sphi 0, %s130
    %s147 = sphi 0, %s131
    %s153 = sphi 0, %s155
    %s156 = sphi 0, %s153
    %s157 = sphi 0, %s156
    %s173 = sphi 0, %s157
  $region4: #{ghost_module_forward.1} parent=0 // loop_header_branch
    %15 = sbr.rel (%p13) target = $region8
  $region5: #{ghost_module_forward.1} parent=0 // loop_body
    %s17 = ssub.s32 %s12, 1
    %s18 = ssub.s32 %s12, 2
    %s19 = sadd.s32 %s12, 1
    %s21 = sadd.s32 %s20, 1
    %p24 = scmp.eq.s32.totalorder %s12, 1
    %p25 = scmp.ne.s32.totalorder %s20, %s22
    %p26 = scmp.eq.s32.totalorder %s12, 0
    %p27 = por %p25, %p26
    %p28 = scmp.ne.s32.totalorder %s20, %s22
    %p29 = scmp.eq.s32.totalorder %s17, 1
    %p30 = por %p28, %p29
    %p31 = scmp.ne.s32.totalorder %s22, %s23
    %p32 = scmp.eq.s32.totalorder %s17, 0
    %p33 = por %p31, %p32
    %p34 = scmp.ne.s32.totalorder %s22, %s23
    %p35 = scmp.eq.s32.totalorder %s18, 1
    %p36 = por %p34, %p35
    %p38 = scmp.ne.s32.totalorder %s23, %s37
    %p39 = scmp.eq.s32.totalorder %s18, 0
    %p40 = por %p38, %p39
    %s42 = sadd.s32 %s41, 1
    %p45 = scmp.eq.s32.totalorder %s12, 1
    %p46 = scmp.ne.s32.totalorder %s41, %s43
    %p47 = scmp.eq.s32.totalorder %s12, 0
    %p48 = por %p46, %p47
    %p49 = scmp.ne.s32.totalorder %s41, %s43
    %p50 = scmp.eq.s32.totalorder %s17, 1
    %p51 = por %p49, %p50
    %p52 = scmp.ne.s32.totalorder %s43, %s44
    %p53 = scmp.eq.s32.totalorder %s17, 0
    %p54 = por %p52, %p53
    %p55 = scmp.ne.s32.totalorder %s43, %s44
    %p56 = scmp.eq.s32.totalorder %s18, 1
    %p57 = por %p55, %p56
    %p59 = scmp.ne.s32.totalorder %s44, %s58
    %p60 = scmp.eq.s32.totalorder %s18, 0
    %p61 = por %p59, %p60
    %s63 = sadd.s32 %s62, 1
    %p66 = scmp.eq.s32.totalorder %s12, 1
    %p67 = scmp.ne.s32.totalorder %s62, %s64
    %p68 = scmp.eq.s32.totalorder %s12, 0
    %p69 = por %p67, %p68
    %p70 = scmp.ne.s32.totalorder %s62, %s64
    %p71 = scmp.eq.s32.totalorder %s17, 1
    %p72 = por %p70, %p71
    %p73 = scmp.ne.s32.totalorder %s64, %s65
    %p74 = scmp.eq.s32.totalorder %s17, 0
    %p75 = por %p73, %p74
    %p76 = scmp.ne.s32.totalorder %s64, %s65
    %p77 = scmp.eq.s32.totalorder %s18, 1
    %p78 = por %p76, %p77
    %p80 = scmp.ne.s32.totalorder %s65, %s79
    %p81 = scmp.eq.s32.totalorder %s18, 0
    %p82 = por %p80, %p81
    %s84 = sadd.s32 %s83, 1
    %p87 = scmp.eq.s32.totalorder %s12, 1
    %p88 = scmp.ne.s32.totalorder %s83, %s85
    %p89 = scmp.eq.s32.totalorder %s12, 0
    %p90 = por %p88, %p89
    %p91 = scmp.ne.s32.totalorder %s83, %s85
    %p92 = scmp.eq.s32.totalorder %s17, 1
    %p93 = por %p91, %p92
    %p94 = scmp.ne.s32.totalorder %s85, %s86
    %p95 = scmp.eq.s32.totalorder %s17, 0
    %p96 = por %p94, %p95
    %p97 = scmp.ne.s32.totalorder %s85, %s86
    %p98 = scmp.eq.s32.totalorder %s18, 1
    %p99 = por %p97, %p98
    %p101 = scmp.ne.s32.totalorder %s86, %s100
    %p102 = scmp.eq.s32.totalorder %s18, 0
    %p103 = por %p101, %p102
    %s105 = sadd.s32 %s104, 1
    %p108 = scmp.eq.s32.totalorder %s12, 1
    %p109 = scmp.ne.s32.totalorder %s104, %s106
    %p110 = scmp.eq.s32.totalorder %s12, 0
    %p111 = por %p109, %p110
    %p112 = scmp.ne.s32.totalorder %s104, %s106
    %p113 = scmp.eq.s32.totalorder %s17, 1
    %p114 = por %p112, %p113
    %p115 = scmp.ne.s32.totalorder %s106, %s107
    %p116 = scmp.eq.s32.totalorder %s17, 0
    %p117 = por %p115, %p116
    %p118 = scmp.ne.s32.totalorder %s106, %s107
    %p119 = scmp.eq.s32.totalorder %s18, 1
    %p120 = por %p118, %p119
    %p122 = scmp.ne.s32.totalorder %s107, %s121
    %p123 = scmp.eq.s32.totalorder %s18, 0
    %p124 = por %p122, %p123
    %s125 = ssub.s32 %s12, %s19
    %p126 = scmp.eq.s32.totalorder %s125, 0
    %s128 = sadd.s32 %s127, 1
    %s129 = scalar_select %p126, %s127, %s128
    %p132 = pneg %p126
    %p133 = scmp.eq.s32.totalorder %s12, 1
    %p134 = por %p132, %p133
    %p135 = scmp.ne.s32.totalorder %s127, %s130
    %p136 = scmp.eq.s32.totalorder %s12, 0
    %p137 = por %p135, %p136
    %p138 = scmp.ne.s32.totalorder %s127, %s130
    %p139 = scmp.eq.s32.totalorder %s17, 1
    %p140 = por %p138, %p139
    %p141 = scmp.ne.s32.totalorder %s130, %s131
    %p142 = scmp.eq.s32.totalorder %s17, 0
    %p143 = por %p141, %p142
    %p144 = scmp.ne.s32.totalorder %s130, %s131
    %p145 = scmp.eq.s32.totalorder %s18, 1
    %p146 = por %p144, %p145
    %p148 = scmp.ne.s32.totalorder %s131, %s147
    %p149 = scmp.eq.s32.totalorder %s18, 0
    %p150 = por %p148, %p149
    %s151 = ssub.s32 %s12, %s19
    %p152 = scmp.eq.s32.totalorder %s151, 0
    %s154 = sadd.s32 %s153, 1
    %s155 = scalar_select %p152, %s153, %s154
    %p158 = pneg %p152
    %p159 = scmp.eq.s32.totalorder %s12, 1
    %p160 = por %p158, %p159
    %p161 = scmp.ne.s32.totalorder %s153, %s156
    %p162 = scmp.eq.s32.totalorder %s12, 0
    %p163 = por %p161, %p162
    %p164 = scmp.ne.s32.totalorder %s153, %s156
    %p165 = scmp.eq.s32.totalorder %s17, 1
    %p166 = por %p164, %p165
    %p167 = scmp.ne.s32.totalorder %s156, %s157
    %p168 = scmp.eq.s32.totalorder %s17, 0
    %p169 = por %p167, %p168
    %p170 = scmp.ne.s32.totalorder %s156, %s157
    %p171 = scmp.eq.s32.totalorder %s18, 1
    %p172 = por %p170, %p171
    %p174 = scmp.ne.s32.totalorder %s157, %s173
    %p175 = scmp.eq.s32.totalorder %s18, 0
    %p176 = por %p174, %p175
    %p177 = scmp.le.s32.totalorder 1, %s12
    %p178 = scmp.lt.s32.totalorder %s12, 3
    %p179 = pnand %p177, %p178
    %p180 = pneg %p179
    // Predicated region
    $region9: #{ghost_module_forward.1} parent=5 // pred_check
      _
    $region10: #{ghost_module_forward.1} parent=5 // pred_check_branch
      %182 = sbr.rel (%p179) target = $region12
    $region11: #{ghost_module_forward.1} parent=5 // pred_region
      %s183 = ssub.s32 %s12, 1
      // Predicated region
      $region13: #{ghost_module_forward.1} parent=11 // pred_check
        %p184 = pneg %p33
      $region14: #{ghost_module_forward.1} parent=11 // pred_check_branch
        %186 = sbr.rel (%p184) target = $region16
      $region15: #{ghost_module_forward.1} parent=11 // pred_region
        _
      $region16: #{ghost_module_forward.1} parent=11 // pred_fallthru
        _
      // Predicated region
      $region17: #{ghost_module_forward.1} parent=11 // pred_check
        %p187 = pneg %p54
      $region18: #{ghost_module_forward.1} parent=11 // pred_check_branch
        %189 = sbr.rel (%p187) target = $region20
      $region19: #{ghost_module_forward.1} parent=11 // pred_region
        _
      $region20: #{ghost_module_forward.1} parent=11 // pred_fallthru
        _
      // Predicated region
      $region21: #{ghost_module_forward.1} parent=11 // pred_check
        %p190 = pneg %p75
      $region22: #{ghost_module_forward.1} parent=11 // pred_check_branch
        %192 = sbr.rel (%p190) target = $region24
      $region23: #{ghost_module_forward.1} parent=11 // pred_region
        _
      $region24: #{ghost_module_forward.1} parent=11 // pred_fallthru
        _
      // Predicated region
      $region25: #{ghost_module_forward.1} parent=11 // pred_check
        %p193 = pneg %p96
      $region26: #{ghost_module_forward.1} parent=11 // pred_check_branch
        %195 = sbr.rel (%p193) target = $region28
      $region27: #{ghost_module_forward.1} parent=11 // pred_region
        _
      $region28: #{ghost_module_forward.1} parent=11 // pred_fallthru
        _
      // Predicated region
      $region29: #{ghost_module_forward.1} parent=11 // pred_check
        %p196 = pneg %p117
      $region30: #{ghost_module_forward.1} parent=11 // pred_check_branch
        %198 = sbr.rel (%p196) target = $region32
      $region31: #{ghost_module_forward.1} parent=11 // pred_region
        _
      $region32: #{ghost_module_forward.1} parent=11 // pred_fallthru
        _
    $region12: #{ghost_module_forward.1} parent=5 // pred_fallthru
      _
    %p199 = scmp.lt.s32.totalorder %s12, 2
    // Predicated region
    $region33: #{ghost_module_forward.1} parent=5 // pred_check
      %p200 = pneg %p199
    $region34: #{ghost_module_forward.1} parent=5 // pred_check_branch
      %202 = sbr.rel (%p200) target = $region36
    $region35: #{ghost_module_forward.1} parent=5 // pred_region
      // Predicated region
      $region37: #{ghost_module_forward.1} parent=35 // pred_check
        %p203 = pneg %p137
      $region38: #{ghost_module_forward.1} parent=35 // pred_check_branch
        %205 = sbr.rel (%p203) target = $region40
      $region39: #{ghost_module_forward.1} parent=35 // pred_region
        %p206 = scmp.lt.s32.totalorder %s12, 1
        %s207 = scalar_select %p206, %s12, 1
        %s208 = smul.addr %s207, 2
        %s209 = smul.addr %s208, 4
        %s210 = scalar_lea.vmem %s5, %s209
      $region40: #{ghost_module_forward.1} parent=35 // pred_fallthru
        _
    $region36: #{ghost_module_forward.1} parent=5 // pred_fallthru
      _
    %p211 = scmp.le.s32.totalorder 1, %s12
    %p212 = scmp.lt.s32.totalorder %s12, 3
    %p213 = pnand %p211, %p212
    %p214 = pneg %p213
    // Predicated region
    $region41: #{ghost_module_forward.1} parent=5 // pred_check
      _
    $region42: #{ghost_module_forward.1} parent=5 // pred_check_branch
      %216 = sbr.rel (%p213) target = $region44
    $region43: #{ghost_module_forward.1} parent=5 // pred_region
      %s217 = ssub.s32 %s12, 1
      %p218 = pneg %p33
      %p219 = pneg %p30
      %p220 = pneg %p54
      %p221 = pneg %p51
      %p222 = pneg %p75
      %p223 = pneg %p72
      %p224 = pneg %p96
      %p225 = pneg %p93
      %p226 = pneg %p117
      %p227 = pneg %p114
      %p228 = scmp.lt.s32.totalorder %s17, 1
      %s229 = scalar_select %p228, %s17, 1
      %s230 = smul.addr %s229, 2
      %s231 = smul.addr %s230, 4
      %s232 = scalar_lea.vmem %s5, %s231
      %p233 = pneg %p143
      %p234 = pneg %p140
      %p235 = pneg %p169
      %p236 = pneg %p166
      %p237 = scmp.lt.s32.totalorder %s17, 1
      %s238 = scalar_select %p237, %s17, 1
      %s239 = smul.addr %s238, 2
      %s240 = smul.addr %s239, 8
      %s241 = scalar_lea.vmem %s6, %s240
      %p242 = scmp.lt.s32.totalorder %s17, 1
      %s243 = scalar_select %p242, %s17, 1
      %s244 = smul.addr %s243, 2
      %s245 = smul.addr %s244, 4
      %s246 = scalar_lea.vmem %s5, %s245
      %p247 = scmp.lt.s32.totalorder %s17, 1
      %s248 = scalar_select %p247, %s17, 1
      %s249 = smul.addr %s248, 2
      %s250 = smul.addr %s249, 8
      %s251 = scalar_lea.vmem %s6, %s250
      %v252 = vld [vmem:[%s0] sm:$0xf]
      %v253 = vld [vmem:[%s1] sm:$0xf]
      %v254 = vld [vmem:[%s2] sm:$0xf]
      %v255 = vld [vmem:[%s3] sm:$0xf]
      %v256 = vld [vmem:[%s246] sm:$0xff]
      %258 = vset.pattern.permute.xlu0 0
      %259 = vperm.xlu0 %258, %v252
      %v260 = vpop.permute.xlu0 %259
      %v263 = vlaneseq
      %v264 = vshrl.u32 %v263, 7
      %v265 = vsub.s32 0, %v264
      %v266 = vrot.slane %v256, %v265
      %v267 = vlaneseq
      %v268 = vshrl.u32 %v267, 7
      %v269 = vsub.s32 4, %v268
      %v270 = vrot.slane %v256, %v269
      %v273 = vlaneseq
      %v274 = vshrl.u32 %v273, 7
      %v275 = vsub.s32 0, %v274
      %v276 = vrot.slane %v266, %v275
      %v277 = vlaneseq
      %v278 = vshrl.u32 %v277, 7
      %v279 = vsub.s32 0, %v278
      %v280 = vrot.slane %v270, %v279
      %v281 = vmul.f32 %v260, %v276
      %v282 = vmul.f32 %v260, %v280
      %v283 = vadd.f32 %v281, 0.0
      %v284 = vadd.f32 %v282, 0.0
      %285 = vset.pattern.permute.xlu0 1
      %286 = vperm.xlu0 %285, %v252
      %v287 = vpop.permute.xlu0 %286
      %v289 = vlaneseq
      %v290 = vshrl.u32 %v289, 7
      %v291 = vsub.s32 1, %v290
      %v292 = vrot.slane %v256, %v291
      %v293 = vlaneseq
      %v294 = vshrl.u32 %v293, 7
      %v295 = vsub.s32 5, %v294
      %v296 = vrot.slane %v256, %v295
      %v299 = vlaneseq
      %v300 = vshrl.u32 %v299, 7
      %v301 = vsub.s32 1, %v300
      %v302 = vrot.slane %v292, %v301
      %v303 = vlaneseq
      %v304 = vshrl.u32 %v303, 7
      %v305 = vsub.s32 1, %v304
      %v306 = vrot.slane %v296, %v305
      %v307 = vmul.f32 %v287, %v302
      %v308 = vmul.f32 %v287, %v306
      %v309 = vadd.f32 %v283, %v307
      %v310 = vadd.f32 %v284, %v308
      %311 = vset.pattern.permute.xlu0 2
      %312 = vperm.xlu0 %311, %v252
      %v313 = vpop.permute.xlu0 %312
      %v315 = vlaneseq
      %v316 = vshrl.u32 %v315, 7
      %v317 = vsub.s32 2, %v316
      %v318 = vrot.slane %v256, %v317
      %v319 = vlaneseq
      %v320 = vshrl.u32 %v319, 7
      %v321 = vsub.s32 6, %v320
      %v322 = vrot.slane %v256, %v321
      %v325 = vlaneseq
      %v326 = vshrl.u32 %v325, 7
      %v327 = vsub.s32 2, %v326
      %v328 = vrot.slane %v318, %v327
      %v329 = vlaneseq
      %v330 = vshrl.u32 %v329, 7
      %v331 = vsub.s32 2, %v330
      %v332 = vrot.slane %v322, %v331
      %v333 = vmul.f32 %v313, %v328
      %v334 = vmul.f32 %v313, %v332
      %v335 = vadd.f32 %v309, %v333
      %v336 = vadd.f32 %v310, %v334
      %337 = vset.pattern.permute.xlu0 3
      %338 = vperm.xlu0 %337, %v252
      %v339 = vpop.permute.xlu0 %338
      %v341 = vlaneseq
      %v342 = vshrl.u32 %v341, 7
      %v343 = vsub.s32 3, %v342
      %v344 = vrot.slane %v256, %v343
      %v345 = vlaneseq
      %v346 = vshrl.u32 %v345, 7
      %v347 = vsub.s32 7, %v346
      %v348 = vrot.slane %v256, %v347
      %v351 = vlaneseq
      %v352 = vshrl.u32 %v351, 7
      %v353 = vsub.s32 3, %v352
      %v354 = vrot.slane %v344, %v353
      %v355 = vlaneseq
      %v356 = vshrl.u32 %v355, 7
      %v357 = vsub.s32 3, %v356
      %v358 = vrot.slane %v348, %v357
      %v359 = vmul.f32 %v339, %v354
      %v360 = vmul.f32 %v339, %v358
      %v361 = vadd.f32 %v335, %v359
      %v362 = vadd.f32 %v336, %v360
      %364 = vset.pattern.permute.xlu0 0
      %365 = vperm.xlu0 %364, %v253
      %v366 = vpop.permute.xlu0 %365
      %v368 = vadd.f32 %v361, %v366
      %v369 = vadd.f32 %v362, %v366
      %v370 = vmax.f32 %v368, 0.0
      %v371 = vmax.f32 %v369, 0.0
      %372 = vst [vmem:[%s251] sm:$0xf] %v370
      %373 = vst [vmem:[%s251 + $0x8] sm:$0xf] %v371
      %374 = vrot.lane.b32.xlu0 %v370, 17
      %v375 = vpop.permute.xlu0 %374
      %376 = vrot.lane.b32.xlu0 %v371, 17
      %v377 = vpop.permute.xlu0 %376
      %v378 = vlaneseq
      %v379 = vand.u32 %v378, 127
      %vm380 = vcmp.lt.s32.totalorder %v379, 17
      %v381 = vsel %vm380, %v375, %v377
      %v382 = vsel %vm380, %v377, %v375
      %v383 = vld [vmem:[%s4] ss:$8 sm:$0x3]
      %v385 = vlaneseq
      %v386 = vshrl.u32 %v385, 7
      %v387 = vsub.s32 0, %v386
      %v388 = vrot.slane %v383, %v387
      %v389 = vlaneseq
      %v390 = vshrl.u32 %v389, 7
      %v391 = vsub.s32 1, %v390
      %v392 = vrot.slane %v383, %v391
      %v395 = vmul.f32 %v382, %v388
      %v396 = vmul.f32 %v381, %v392
      %398 = vset.pattern.permute.xlu0 0
      %399 = vperm.xlu0 %398, %v254
      %v400 = vpop.permute.xlu0 %399
      %v402 = vmul.f32 %v400, %v395
      %v403 = vmul.f32 %v400, %v396
      %v404 = vadd.f32 %v402, 0.0
      %v405 = vadd.f32 %v403, 0.0
      %406 = vrot.lane.b32.xlu0 %v370, 16
      %v407 = vpop.permute.xlu0 %406
      %408 = vrot.lane.b32.xlu0 %v371, 16
      %v409 = vpop.permute.xlu0 %408
      %vm410 = vcmp.lt.s32.totalorder %v379, 16
      %v411 = vsel %vm410, %v407, %v409
      %v412 = vsel %vm410, %v409, %v407
      %s413 = scalar_lea.vmem %s4, 1
      %v414 = vld [vmem:[%s413] ss:$8 sm:$0x3]
      %v416 = vlaneseq
      %v417 = vshrl.u32 %v416, 7
      %v418 = vsub.s32 0, %v417
      %v419 = vrot.slane %v414, %v418
      %v420 = vlaneseq
      %v421 = vshrl.u32 %v420, 7
      %v422 = vsub.s32 1, %v421
      %v423 = vrot.slane %v414, %v422
      %v426 = vmul.f32 %v412, %v419
      %v427 = vmul.f32 %v411, %v423
      %428 = vset.pattern.permute.xlu0 1
      %429 = vperm.xlu0 %428, %v254
      %v430 = vpop.permute.xlu0 %429
      %v432 = vmul.f32 %v430, %v426
      %v433 = vmul.f32 %v430, %v427
      %v434 = vadd.f32 %v404, %v432
      %v435 = vadd.f32 %v405, %v433
      %436 = vrot.lane.b32.xlu0 %v370, 15
      %v437 = vpop.permute.xlu0 %436
      %438 = vrot.lane.b32.xlu0 %v371, 15
      %v439 = vpop.permute.xlu0 %438
      %vm440 = vcmp.lt.s32.totalorder %v379, 15
      %v441 = vsel %vm440, %v437, %v439
      %v442 = vsel %vm440, %v439, %v437
      %s443 = scalar_lea.vmem %s4, 2
      %v444 = vld [vmem:[%s443] ss:$8 sm:$0x3]
      %v446 = vlaneseq
      %v447 = vshrl.u32 %v446, 7
      %v448 = vsub.s32 0, %v447
      %v449 = vrot.slane %v444, %v448
      %v450 = vlaneseq
      %v451 = vshrl.u32 %v450, 7
      %v452 = vsub.s32 1, %v451
      %v453 = vrot.slane %v444, %v452
      %v456 = vmul.f32 %v442, %v449
      %v457 = vmul.f32 %v441, %v453
      %458 = vset.pattern.permute.xlu0 2
      %459 = vperm.xlu0 %458, %v254
      %v460 = vpop.permute.xlu0 %459
      %v462 = vmul.f32 %v460, %v456
      %v463 = vmul.f32 %v460, %v457
      %v464 = vadd.f32 %v434, %v462
      %v465 = vadd.f32 %v435, %v463
      %466 = vrot.lane.b32.xlu0 %v370, 1
      %v467 = vpop.permute.xlu0 %466
      %468 = vrot.lane.b32.xlu0 %v371, 1
      %v469 = vpop.permute.xlu0 %468
      %vm470 = vcmp.lt.s32.totalorder %v379, 1
      %v471 = vsel %vm470, %v467, %v469
      %v472 = vsel %vm470, %v469, %v467
      %s473 = scalar_lea.vmem %s4, 3
      %v474 = vld [vmem:[%s473] ss:$8 sm:$0x3]
      %v476 = vlaneseq
      %v477 = vshrl.u32 %v476, 7
      %v478 = vsub.s32 0, %v477
      %v479 = vrot.slane %v474, %v478
      %v480 = vlaneseq
      %v481 = vshrl.u32 %v480, 7
      %v482 = vsub.s32 1, %v481
      %v483 = vrot.slane %v474, %v482
      %v486 = vmul.f32 %v472, %v479
      %v487 = vmul.f32 %v471, %v483
      %488 = vset.pattern.permute.xlu0 3
      %489 = vperm.xlu0 %488, %v254
      %v490 = vpop.permute.xlu0 %489
      %v492 = vmul.f32 %v490, %v486
      %v493 = vmul.f32 %v490, %v487
      %v494 = vadd.f32 %v464, %v492
      %v495 = vadd.f32 %v465, %v493
      %496 = vset.pattern.permute.xlu0 4
      %497 = vperm.xlu0 %496, %v254
      %v498 = vpop.permute.xlu0 %497
      %v500 = vmul.f32 %v498, %v370
      %v501 = vmul.f32 %v498, %v371
      %v502 = vadd.f32 %v494, %v500
      %v503 = vadd.f32 %v495, %v501
      %504 = vrot.lane.b32.xlu0 %v370, 127
      %v505 = vpop.permute.xlu0 %504
      %506 = vrot.lane.b32.xlu0 %v371, 127
      %v507 = vpop.permute.xlu0 %506
      %vm508 = vcmp.lt.s32.totalorder %v379, 127
      %v509 = vsel %vm508, %v505, %v507
      %v510 = vsel %vm508, %v507, %v505
      %s511 = scalar_lea.vmem %s4, 5
      %v512 = vld [vmem:[%s511] ss:$8 sm:$0x3]
      %v514 = vlaneseq
      %v515 = vshrl.u32 %v514, 7
      %v516 = vsub.s32 0, %v515
      %v517 = vrot.slane %v512, %v516
      %v518 = vlaneseq
      %v519 = vshrl.u32 %v518, 7
      %v520 = vsub.s32 1, %v519
      %v521 = vrot.slane %v512, %v520
      %v524 = vmul.f32 %v509, %v517
      %v525 = vmul.f32 %v510, %v521
      %526 = vset.pattern.permute.xlu0 5
      %527 = vperm.xlu0 %526, %v254
      %v528 = vpop.permute.xlu0 %527
      %v530 = vmul.f32 %v528, %v524
      %v531 = vmul.f32 %v528, %v525
      %v532 = vadd.f32 %v502, %v530
      %v533 = vadd.f32 %v503, %v531
      %534 = vrot.lane.b32.xlu0 %v370, 113
      %v535 = vpop.permute.xlu0 %534
      %536 = vrot.lane.b32.xlu0 %v371, 113
      %v537 = vpop.permute.xlu0 %536
      %vm538 = vcmp.lt.s32.totalorder %v379, 113
      %v539 = vsel %vm538, %v535, %v537
      %v540 = vsel %vm538, %v537, %v535
      %s541 = scalar_lea.vmem %s4, 6
      %v542 = vld [vmem:[%s541] ss:$8 sm:$0x3]
      %v544 = vlaneseq
      %v545 = vshrl.u32 %v544, 7
      %v546 = vsub.s32 0, %v545
      %v547 = vrot.slane %v542, %v546
      %v548 = vlaneseq
      %v549 = vshrl.u32 %v548, 7
      %v550 = vsub.s32 1, %v549
      %v551 = vrot.slane %v542, %v550
      %v554 = vmul.f32 %v539, %v547
      %v555 = vmul.f32 %v540, %v551
      %556 = vset.pattern.permute.xlu0 6
      %557 = vperm.xlu0 %556, %v254
      %v558 = vpop.permute.xlu0 %557
      %v560 = vmul.f32 %v558, %v554
      %v561 = vmul.f32 %v558, %v555
      %v562 = vadd.f32 %v532, %v560
      %v563 = vadd.f32 %v533, %v561
      %564 = vrot.lane.b32.xlu0 %v370, 112
      %v565 = vpop.permute.xlu0 %564
      %566 = vrot.lane.b32.xlu0 %v371, 112
      %v567 = vpop.permute.xlu0 %566
      %vm568 = vcmp.lt.s32.totalorder %v379, 112
      %v569 = vsel %vm568, %v565, %v567
      %v570 = vsel %vm568, %v567, %v565
      %s571 = scalar_lea.vmem %s4, 7
      %v572 = vld [vmem:[%s571] ss:$8 sm:$0x3]
      %v574 = vlaneseq
      %v575 = vshrl.u32 %v574, 7
      %v576 = vsub.s32 0, %v575
      %v577 = vrot.slane %v572, %v576
      %v578 = vlaneseq
      %v579 = vshrl.u32 %v578, 7
      %v580 = vsub.s32 1, %v579
      %v581 = vrot.slane %v572, %v580
      %v584 = vmul.f32 %v569, %v577
      %v585 = vmul.f32 %v570, %v581
      %586 = vset.pattern.permute.xlu0 7
      %587 = vperm.xlu0 %586, %v254
      %v588 = vpop.permute.xlu0 %587
      %v590 = vmul.f32 %v588, %v584
      %v591 = vmul.f32 %v588, %v585
      %v592 = vadd.f32 %v562, %v590
      %v593 = vadd.f32 %v563, %v591
      %594 = vrot.lane.b32.xlu0 %v370, 111
      %v595 = vpop.permute.xlu0 %594
      %596 = vrot.lane.b32.xlu0 %v371, 111
      %v597 = vpop.permute.xlu0 %596
      %vm598 = vcmp.lt.s32.totalorder %v379, 111
      %v599 = vsel %vm598, %v595, %v597
      %v600 = vsel %vm598, %v597, %v595
      %s601 = scalar_lea.vmem %s4, 16
      %v602 = vld [vmem:[%s601] ss:$8 sm:$0x3]
      %v604 = vlaneseq
      %v605 = vshrl.u32 %v604, 7
      %v606 = vsub.s32 0, %v605
      %v607 = vrot.slane %v602, %v606
      %v608 = vlaneseq
      %v609 = vshrl.u32 %v608, 7
      %v610 = vsub.s32 1, %v609
      %v611 = vrot.slane %v602, %v610
      %v614 = vmul.f32 %v599, %v607
      %v615 = vmul.f32 %v600, %v611
      %616 = vset.pattern.permute.xlu0 8
      %617 = vperm.xlu0 %616, %v254
      %v618 = vpop.permute.xlu0 %617
      %v620 = vmul.f32 %v618, %v614
      %v621 = vmul.f32 %v618, %v615
      %v622 = vadd.f32 %v592, %v620
      %v623 = vadd.f32 %v593, %v621
      %625 = vset.pattern.permute.xlu0 0
      %626 = vperm.xlu0 %625, %v255
      %v627 = vpop.permute.xlu0 %626
      %v629 = vadd.f32 %v622, %v627
      %v630 = vadd.f32 %v623, %v627
      %v631 = vmax.f32 %v629, 0.0
      %v632 = vmax.f32 %v630, 0.0
      %v635 = vrot.slane %v631, 4
      %v636 = vrot.slane %v632, 4
      %639 = vst [vmem:[%s251] sm:$0xf0] %v635
      %640 = vst [vmem:[%s251 + $0x8] sm:$0xf0] %v636
      %p641 = scmp.lt.s32.totalorder %s17, 1
      %s642 = scalar_select %p641, %s17, 1
      %s643 = smul.addr %s642, 2
      %s644 = smul.addr %s643, 8
      %s645 = scalar_lea.vmem %s6, %s644
      // Predicated region
      $region45: #{ghost_module_forward.1} parent=43 // pred_check
        %p646 = pneg %p166
      $region46: #{ghost_module_forward.1} parent=43 // pred_check_branch
        %648 = sbr.rel (%p646) target = $region48
      $region47: #{ghost_module_forward.1} parent=43 // pred_region
        _
      $region48: #{ghost_module_forward.1} parent=43 // pred_fallthru
        _
    $region44: #{ghost_module_forward.1} parent=5 // pred_fallthru
      _
    %p649 = scmp.le.s32.totalorder 2, %s12
    // Predicated region
    $region49: #{ghost_module_forward.1} parent=5 // pred_check
      %p650 = pneg %p649
    $region50: #{ghost_module_forward.1} parent=5 // pred_check_branch
      %652 = sbr.rel (%p650) target = $region52
    $region51: #{ghost_module_forward.1} parent=5 // pred_region
      %s653 = ssub.s32 %s12, 2
      // Predicated region
      $region53: #{ghost_module_forward.1} parent=51 // pred_check
        %p654 = pneg %p172
      $region54: #{ghost_module_forward.1} parent=51 // pred_check_branch
        %656 = sbr.rel (%p654) target = $region56
      $region55: #{ghost_module_forward.1} parent=51 // pred_region
        %p657 = scmp.lt.s32.totalorder %s18, 1
        %s658 = scalar_select %p657, %s18, 1
        %s659 = smul.addr %s658, 2
        %s660 = smul.addr %s659, 8
        %s661 = scalar_lea.vmem %s6, %s660
      $region56: #{ghost_module_forward.1} parent=51 // pred_fallthru
        _
    $region52: #{ghost_module_forward.1} parent=5 // pred_fallthru
      _
  $region6: #{ghost_module_forward.1} parent=0 // loop_footer
    %s16 = sadd.s32 1, %s12
  $region7: #{ghost_module_forward.1} parent=0 // loop_footer_branch
    %11 = sbr.rel target = $region3
  $region8: #{ghost_module_forward.1} parent=0 // loop_exit
    _

</llo_original>
